<compile_context>
chip_gen: v7x
topology: tpu7x:2x2x1
jax: 0.10.0
libtpu: 0.0.40
codegen_flags: <defaults>
</compile_context>

<pallas_src>
import jax
import jax.numpy as jnp
from jax.experimental import pallas as pl
from jax.experimental.pallas import tpu as pltpu


def _round_up(x, m):
    return ((x + m - 1) // m) * m


# ----------------------------------------------------------------------------
# Pallas kernel: fused forward pass.
# ----------------------------------------------------------------------------
def _meta_network_kernel(
    grad_ref,         # [TB, WL]  f32
    heur_ref,         # [TB, WL]  f32
    z_ref,            # [TB, E]   f32
    mask_ref,         # [TB, WL]  int8
    w1_ref, b1_ref,   # [2*WL+E, 3H], [1, 3H]   (block-diag fused layer 1)
    w2_ref, b2_ref,   # [3H, 2H],     [1, 2H]   (block-diag fused layer 2)
    w3_ref, b3_ref,   # [2H, H],      [1, H]    (context_combiner layer 1)
    wd_ref, bd_ref,   # [1, H],       [1, 1]    (logit-difference head)
    logits_ref,       # [TB, WL]
    probs_ref,        # [TB, WL]
):
    grad = grad_ref[...]
    heur = heur_ref[...]

    # Lane-dim concat of 128-aligned pieces: vreg column placement only,
    # no cross-lane shuffles.  Feeds the block-diagonal fused W1.
    x = jnp.concatenate([grad, heur, z_ref[...]], axis=1)      # [TB, 2*WL+E]

    # Fused feature extractors + context net (2 MXU matmuls, no concats).
    h1 = jnp.maximum(
        jnp.dot(x, w1_ref[...], preferred_element_type=jnp.float32) + b1_ref[...],
        0.0)                                                    # [TB, 3H]
    feats = (jnp.dot(h1, w2_ref[...], preferred_element_type=jnp.float32)
             + b2_ref[...])                                     # [TB, 2H] = [gf|hf|ctx]

    # context_combiner hidden layer.
    h3 = jnp.maximum(
        jnp.dot(feats, w3_ref[...], preferred_element_type=jnp.float32) + b3_ref[...],
        0.0)                                                    # [TB, H]

    # 2-way softmax head collapsed to sigmoid of the logit difference.
    # N=1 head done on VPU (broadcast mul) + XLU (lane reduce), off the MXU.
    diff = jnp.sum(h3 * wd_ref[...], axis=-1, keepdims=True) + bd_ref[...]  # [TB,1]
    grad_w = 1.0 / (1.0 + jnp.exp(-diff))                       # softmax[:, 0] (exact)
    heur_w = 1.0 - grad_w                                       # softmax[:, 1]

    ens = grad_w * grad + heur_w * heur                         # [TB, WL]
    masked = jnp.where(mask_ref[...] != 0, ens, jnp.float32(-1e9))

    # Softmax over the flattened W*L axis (lane-dense).  Exact divide so the
    # row sums stay at 1 to f32 precision.
    m = jnp.max(masked, axis=-1, keepdims=True)
    e = jnp.exp(masked - m)
    denom = jnp.sum(e, axis=-1, keepdims=True)
    probs = e / denom

    logits_ref[...] = ens
    probs_ref[...] = probs


# ----------------------------------------------------------------------------
# Wrapper-side weight fusion (one-time layout work; nn.Linear weights are
# stored transposed as [in, out]).
# ----------------------------------------------------------------------------
def _fuse_params(params, WL, H, E):
    # NOTE(v5e): the fused [2*WL+E, 3H] W1 is 2/3 zeros; on a 128x128 MXU that
    # doubles layer-1 tile passes vs. three separate matmuls.  Keep the fusion
    # on v6e/v7x (256x256 MXU); gate a v5e split on a bundle profile.
    Hh = H // 2

    w1 = jnp.zeros((2 * WL + E, 3 * H), jnp.float32)
    w1 = w1.at[:WL, :H].set(params["g_w1"])
    w1 = w1.at[WL:2 * WL, H:2 * H].set(params["h_w1"])
    w1 = w1.at[2 * WL:, 2 * H:].set(params["c_w1"])
    b1 = jnp.concatenate([params["g_b1"], params["h_b1"], params["c_b1"]], axis=1)

    w2 = jnp.zeros((3 * H, 2 * H), jnp.float32)
    w2 = w2.at[:H, :Hh].set(params["g_w2"])
    w2 = w2.at[H:2 * H, Hh:2 * Hh].set(params["h_w2"])
    w2 = w2.at[2 * H:, H:].set(params["c_w2"])
    b2 = jnp.concatenate([params["g_b2"], params["h_b2"], params["c_b2"]], axis=1)

    w3 = params["cc_w1"]          # [2H, H]
    b3 = params["cc_b1"]          # [1, H]
    # Logit-difference head, stored row-major [1, H] for the VPU path.
    wd = (params["cc_w2"][:, 0] - params["cc_w2"][:, 1]).reshape(1, H)
    bd = params["cc_b2"][:, 0:1] - params["cc_b2"][:, 1:2]     # [1, 1]
    return (w1, b1, w2, b2, w3, b3, wd, bd)


# ----------------------------------------------------------------------------
# Wrapper
# ----------------------------------------------------------------------------
def meta_network_forward(grad_logits, heur_logits, valid_mask, z_t, params,
                         *, batch_tile=512):
    """grad_logits/heur_logits/valid_mask: [B, W, L]; z_t: [B, E]."""
    # TODO(synk): only the context path (z_t provided) is implemented; the
    # `self.combiner` branch (use_context=False / z_t=None) is not exercised.
    B, W, L = grad_logits.shape
    WL = W * L
    E = z_t.shape[1]
    H = params["c_w2"].shape[1]           # hidden_dim

    fused = _fuse_params(params, WL, H, E)
    weight_bytes = sum(int(w.size) for w in fused) * 4

    # Three separate batch streams -- no wrapper-side concat HBM round trip.
    grad2d = grad_logits.reshape(B, WL).astype(jnp.float32)
    heur2d = heur_logits.reshape(B, WL).astype(jnp.float32)
    z2d = z_t.astype(jnp.float32)
    mask2d = valid_mask.reshape(B, WL).astype(jnp.int8)       # int8 mask stream

    # Batch-tile selection:
    #  * B <= batch_tile: single grid step, pad to a multiple of 8 (block ==
    #    full array, so any sublane multiple is legal).
    #  * batch_tile < B <= 2*batch_tile: two steps so v7x's second TensorCore
    #    gets work; round to 32 so the packed int8 mask tiling stays legal.
    #  * otherwise: batch_tile rows per step (multiple of 32).
    if B <= batch_tile:
        TB = _round_up(B, 8)
    elif B <= 2 * batch_tile:
        TB = _round_up(-(-B // 2), 32)
    else:
        TB = batch_tile
    B_pad = _round_up(B, TB)
    if B_pad != B:
        pad = ((0, B_pad - B), (0, 0))
        grad2d = jnp.pad(grad2d, pad)
        heur2d = jnp.pad(heur2d, pad)
        z2d = jnp.pad(z2d, pad)
        mask2d = jnp.pad(mask2d, pad)

    grid = (B_pad // TB,)
    Din = 2 * WL + E

    def batch_spec(cols):
        return pl.BlockSpec((TB, cols), lambda i: (i, 0))

    def weight_spec(shape):
        # Constant index_map -> weight tile stays resident across grid steps.
        return pl.BlockSpec(tuple(shape), lambda i: (0, 0))

    in_specs = ([batch_spec(WL), batch_spec(WL), batch_spec(E), batch_spec(WL)]
                + [weight_spec(w.shape) for w in fused])
    out_specs = (batch_spec(WL), batch_spec(WL))

    # VMEM estimate (double-buffered streams + weights + scratch margin).
    # Only raise the limit above the conservative 16 MiB (v5e scoped default)
    # when the tile actually needs it; cap at v7x's 64 MiB physical VMEM.
    stream_bytes = TB * (2 * WL * 4 + E * 4 + WL + 2 * WL * 4)
    vmem_est = 2 * (stream_bytes + weight_bytes) + (2 << 20)
    compiler_kwargs = {}
    if vmem_est > (16 << 20):
        compiler_kwargs["vmem_limit_bytes"] = int(min(vmem_est, 64 << 20))

    flops = (2 * B_pad * (Din * 3 * H + 3 * H * 2 * H + 2 * H * H + H)
             + 8 * B_pad * WL)
    bytes_accessed = (B_pad * (2 * WL + E) * 4 + B_pad * WL
                      + weight_bytes + 2 * B_pad * WL * 4)

    logits, probs = pl.pallas_call(
        _meta_network_kernel,
        grid=grid,
        in_specs=in_specs,
        out_specs=out_specs,
        out_shape=(
            jax.ShapeDtypeStruct((B_pad, WL), jnp.float32),
            jax.ShapeDtypeStruct((B_pad, WL), jnp.float32),
        ),
        compiler_params=pltpu.CompilerParams(
            dimension_semantics=("parallel",), **compiler_kwargs),
        cost_estimate=pl.CostEstimate(
            flops=flops,
            transcendentals=B_pad * (WL + 1),
            bytes_accessed=bytes_accessed),
    )(grad2d, heur2d, z2d, mask2d, *fused)

    return logits[:B].reshape(B, W, L), probs[:B].reshape(B, W, L)


# ----------------------------------------------------------------------------
# Deterministic parameter init (nn.Linear weights stored as [in, out])
# ----------------------------------------------------------------------------
def init_params(key, WL, hidden_dim, embedding_dim):
    H, Hh, E = hidden_dim, hidden_dim // 2, embedding_dim
    shapes = {
        "g_w1": (WL, H), "g_b1": (1, H), "g_w2": (H, Hh), "g_b2": (1, Hh),
        "h_w1": (WL, H), "h_b1": (1, H), "h_w2": (H, Hh), "h_b2": (1, Hh),
        "c_w1": (E, H), "c_b1": (1, H), "c_w2": (H, H), "c_b2": (1, H),
        "cc_w1": (2 * H, H), "cc_b1": (1, H), "cc_w2": (H, 2), "cc_b2": (1, 2),
    }
    params = {}
    for name, shape in sorted(shapes.items()):
        key, sub = jax.random.split(key)
        fan_in = shape[0] if "_w" in name else shape[1]
        scale = 1.0 / jnp.sqrt(jnp.float32(fan_in))
        params[name] = jax.random.normal(sub, shape, jnp.float32) * scale
    return params


# ----------------------------------------------------------------------------
# Pure-JAX reference (mirrors PyTorch forward exactly, unfused weights)
# ----------------------------------------------------------------------------
def reference_forward(grad_logits, heur_logits, valid_mask, z_t, p):
    B, W, L = grad_logits.shape
    g = grad_logits.reshape(B, -1)
    h = heur_logits.reshape(B, -1)
    gf = jnp.maximum(g @ p["g_w1"] + p["g_b1"], 0) @ p["g_w2"] + p["g_b2"]
    hf = jnp.maximum(h @ p["h_w1"] + p["h_b1"], 0) @ p["h_w2"] + p["h_b2"]
    comb = jnp.concatenate([gf, hf], axis=1)
    ctx = jnp.maximum(z_t @ p["c_w1"] + p["c_b1"], 0) @ p["c_w2"] + p["c_b2"]
    cc = jnp.concatenate([comb, ctx], axis=1)
    w = jnp.maximum(cc @ p["cc_w1"] + p["cc_b1"], 0) @ p["cc_w2"] + p["cc_b2"]
    nw = jax.nn.softmax(w, axis=1)
    gw = nw[:, 0].reshape(B, 1, 1)
    hw = nw[:, 1].reshape(B, 1, 1)
    ens = gw * grad_logits + hw * heur_logits
    masked = jnp.where(valid_mask, ens, -1e9)
    probs = jax.nn.softmax(masked.reshape(B, -1), axis=1).reshape(B, W, L)
    return ens, probs


if __name__ == "__main__":
    # Small shapes consistent with the module defaults:
    # W*L = 128 (lane-dense), hidden_dim=64, embedding_dim=128.
    B, W, L = 2, 8, 16
    hidden_dim, embedding_dim = 64, 128

    key = jax.random.PRNGKey(0)
    k_p, k_g, k_h, k_m, k_z = jax.random.split(key, 5)

    params = init_params(k_p, W * L, hidden_dim, embedding_dim)

    grad_logits = jax.random.normal(k_g, (B, W, L), jnp.float32)
    heur_logits = jax.random.normal(k_h, (B, W, L), jnp.float32)
    valid_mask = jax.random.uniform(k_m, (B, W, L)) > 0.2      # boolean mask
    z_t = jax.random.normal(k_z, (B, embedding_dim), jnp.float32)

    ens_logits, ens_probs = meta_network_forward(
        grad_logits, heur_logits, valid_mask, z_t, params)
    jax.block_until_ready((ens_logits, ens_probs))

    ref_logits, ref_probs = reference_forward(
        grad_logits, heur_logits, valid_mask, z_t, params)

    assert ens_logits.shape == (B, W, L) and ens_probs.shape == (B, W, L)
    assert jnp.allclose(ens_logits, ref_logits, atol=1e-4, rtol=1e-4)
    assert jnp.allclose(ens_probs, ref_probs, atol=1e-5, rtol=1e-4)
    assert jnp.allclose(jnp.sum(ens_probs.reshape(B, -1), axis=1), 1.0, atol=1e-4)

    print("KERNEL_OK")
</pallas_src>

<mosaic_0001>
module attributes {stable_mosaic.version = 11 : i64} {
  func.func @_meta_network_kernel(%arg0: i32, %arg1: memref<8x128xf32, #tpu.memory_space<vmem>>, %arg2: memref<8x128xf32, #tpu.memory_space<vmem>>, %arg3: memref<8x128xf32, #tpu.memory_space<vmem>>, %arg4: memref<8x128xi8, #tpu.memory_space<vmem>>, %arg5: memref<384x192xf32, #tpu.memory_space<vmem>>, %arg6: memref<1x192xf32, #tpu.memory_space<vmem>>, %arg7: memref<192x128xf32, #tpu.memory_space<vmem>>, %arg8: memref<1x128xf32, #tpu.memory_space<vmem>>, %arg9: memref<128x64xf32, #tpu.memory_space<vmem>>, %arg10: memref<1x64xf32, #tpu.memory_space<vmem>>, %arg11: memref<1x64xf32, #tpu.memory_space<vmem>>, %arg12: memref<1x1xf32, #tpu.memory_space<vmem>>, %arg13: memref<8x128xf32, #tpu.memory_space<vmem>>, %arg14: memref<8x128xf32, #tpu.memory_space<vmem>>) attributes {dimension_semantics = [#tpu.dimension_semantics<parallel>], iteration_bounds = array<i64: 1>, scalar_prefetch = 0 : i64, scratch_operands = 0 : i64, tpu.core_type = #tpu.core_type<tc>, window_params = [{transform_indices = @transform_0, window_bounds = array<i64: 8, 128>}, {transform_indices = @transform_1, window_bounds = array<i64: 8, 128>}, {transform_indices = @transform_2, window_bounds = array<i64: 8, 128>}, {transform_indices = @transform_3, window_bounds = array<i64: 8, 128>}, {pipeline_mode = #tpu.pipeline_mode<synchronous>, transform_indices = @transform_4, window_bounds = array<i64: 384, 192>}, {pipeline_mode = #tpu.pipeline_mode<synchronous>, transform_indices = @transform_5, window_bounds = array<i64: 1, 192>}, {pipeline_mode = #tpu.pipeline_mode<synchronous>, transform_indices = @transform_6, window_bounds = array<i64: 192, 128>}, {pipeline_mode = #tpu.pipeline_mode<synchronous>, transform_indices = @transform_7, window_bounds = array<i64: 1, 128>}, {pipeline_mode = #tpu.pipeline_mode<synchronous>, transform_indices = @transform_8, window_bounds = array<i64: 128, 64>}, {pipeline_mode = #tpu.pipeline_mode<synchronous>, transform_indices = @transform_9, window_bounds = array<i64: 1, 64>}, {pipeline_mode = #tpu.pipeline_mode<synchronous>, transform_indices = @transform_10, window_bounds = array<i64: 1, 64>}, {pipeline_mode = #tpu.pipeline_mode<synchronous>, transform_indices = @transform_11, window_bounds = array<i64: 1, 1>}, {transform_indices = @transform_12, window_bounds = array<i64: 8, 128>}, {transform_indices = @transform_13, window_bounds = array<i64: 8, 128>}]} {
    %c0 = arith.constant 0 : index
    %c0_0 = arith.constant 0 : index
    %0 = vector.load %arg1[%c0, %c0_0] : memref<8x128xf32, #tpu.memory_space<vmem>>, vector<8x128xf32>
    %c0_1 = arith.constant 0 : index
    %c0_2 = arith.constant 0 : index
    %1 = vector.load %arg2[%c0_1, %c0_2] : memref<8x128xf32, #tpu.memory_space<vmem>>, vector<8x128xf32>
    %c0_3 = arith.constant 0 : index
    %c0_4 = arith.constant 0 : index
    %2 = vector.load %arg3[%c0_3, %c0_4] : memref<8x128xf32, #tpu.memory_space<vmem>>, vector<8x128xf32>
    %3 = tpu.concatenate %0, %1, %2 in 1 : vector<8x128xf32>, vector<8x128xf32>, vector<8x128xf32> -> vector<8x384xf32>
    %c0_5 = arith.constant 0 : index
    %c0_6 = arith.constant 0 : index
    %4 = vector.load %arg5[%c0_5, %c0_6] : memref<384x192xf32, #tpu.memory_space<vmem>>, vector<384x192xf32>
    %cst = arith.constant dense<0.000000e+00> : vector<8x192xf32>
    %5 = tpu.matmul %3, %4, %cst {dimension_numbers = #tpu.dot_dimension_numbers<[1], [0], [0], [1], [0, 0, 1, 1], [], []>} : vector<8x384xf32>, vector<384x192xf32>, vector<8x192xf32> -> vector<8x192xf32>
    %c0_7 = arith.constant 0 : index
    %c0_8 = arith.constant 0 : index
    %6 = vector.load %arg6[%c0_7, %c0_8] : memref<1x192xf32, #tpu.memory_space<vmem>>, vector<1x192xf32>
    %7 = vector.broadcast %6 : vector<1x192xf32> to vector<8x192xf32>
    %8 = arith.addf %5, %7 : vector<8x192xf32>
    %cst_9 = arith.constant 0.000000e+00 : f32
    %9 = vector.broadcast %cst_9 : f32 to vector<8x192xf32>
    %10 = arith.maximumf %8, %9 : vector<8x192xf32>
    %c0_10 = arith.constant 0 : index
    %c0_11 = arith.constant 0 : index
    %11 = vector.load %arg7[%c0_10, %c0_11] : memref<192x128xf32, #tpu.memory_space<vmem>>, vector<192x128xf32>
    %cst_12 = arith.constant dense<0.000000e+00> : vector<8x128xf32>
    %12 = tpu.matmul %10, %11, %cst_12 {dimension_numbers = #tpu.dot_dimension_numbers<[1], [0], [0], [1], [0, 0, 1, 1], [], []>} : vector<8x192xf32>, vector<192x128xf32>, vector<8x128xf32> -> vector<8x128xf32>
    %c0_13 = arith.constant 0 : index
    %c0_14 = arith.constant 0 : index
    %13 = vector.load %arg8[%c0_13, %c0_14] : memref<1x128xf32, #tpu.memory_space<vmem>>, vector<1x128xf32>
    %14 = vector.broadcast %13 : vector<1x128xf32> to vector<8x128xf32>
    %15 = arith.addf %12, %14 : vector<8x128xf32>
    %c0_15 = arith.constant 0 : index
    %c0_16 = arith.constant 0 : index
    %16 = vector.load %arg9[%c0_15, %c0_16] : memref<128x64xf32, #tpu.memory_space<vmem>>, vector<128x64xf32>
    %cst_17 = arith.constant dense<0.000000e+00> : vector<8x64xf32>
    %17 = tpu.matmul %15, %16, %cst_17 {dimension_numbers = #tpu.dot_dimension_numbers<[1], [0], [0], [1], [0, 0, 1, 1], [], []>} : vector<8x128xf32>, vector<128x64xf32>, vector<8x64xf32> -> vector<8x64xf32>
    %c0_18 = arith.constant 0 : index
    %c0_19 = arith.constant 0 : index
    %18 = vector.load %arg10[%c0_18, %c0_19] : memref<1x64xf32, #tpu.memory_space<vmem>>, vector<1x64xf32>
    %19 = vector.broadcast %18 : vector<1x64xf32> to vector<8x64xf32>
    %20 = arith.addf %17, %19 : vector<8x64xf32>
    %cst_20 = arith.constant 0.000000e+00 : f32
    %21 = vector.broadcast %cst_20 : f32 to vector<8x64xf32>
    %22 = arith.maximumf %20, %21 : vector<8x64xf32>
    %c0_21 = arith.constant 0 : index
    %c0_22 = arith.constant 0 : index
    %23 = vector.load %arg11[%c0_21, %c0_22] : memref<1x64xf32, #tpu.memory_space<vmem>>, vector<1x64xf32>
    %24 = vector.broadcast %23 : vector<1x64xf32> to vector<8x64xf32>
    %25 = arith.mulf %22, %24 : vector<8x64xf32>
    %cst_23 = arith.constant dense<0.000000e+00> : vector<8xf32>
    %26 = vector.multi_reduction <add>, %25, %cst_23 [1] : vector<8x64xf32> to vector<8xf32>
    %27 = vector.shape_cast %26 : vector<8xf32> to vector<8x1xf32>
    %c0_24 = arith.constant 0 : index
    %c0_25 = arith.constant 0 : index
    %28 = vector.load %arg12[%c0_24, %c0_25] : memref<1x1xf32, #tpu.memory_space<vmem>>, vector<1x1xf32>
    %29 = vector.broadcast %28 : vector<1x1xf32> to vector<8x1xf32>
    %30 = arith.addf %27, %29 : vector<8x1xf32>
    %cst_26 = arith.constant 0.000000e+00 : f32
    %31 = vector.broadcast %cst_26 : f32 to vector<8x1xf32>
    %32 = arith.subf %31, %30 : vector<8x1xf32>
    %33 = math.exp %32 : vector<8x1xf32>
    %cst_27 = arith.constant 1.000000e+00 : f32
    %34 = vector.broadcast %cst_27 : f32 to vector<8x1xf32>
    %35 = arith.addf %34, %33 : vector<8x1xf32>
    %cst_28 = arith.constant 1.000000e+00 : f32
    %36 = vector.broadcast %cst_28 : f32 to vector<8x1xf32>
    %37 = arith.divf %36, %35 : vector<8x1xf32>
    %cst_29 = arith.constant 1.000000e+00 : f32
    %38 = vector.broadcast %cst_29 : f32 to vector<8x1xf32>
    %39 = arith.subf %38, %37 : vector<8x1xf32>
    %40 = vector.broadcast %37 : vector<8x1xf32> to vector<8x128xf32>
    %41 = arith.mulf %40, %0 : vector<8x128xf32>
    %42 = vector.broadcast %39 : vector<8x1xf32> to vector<8x128xf32>
    %43 = arith.mulf %42, %1 : vector<8x128xf32>
    %44 = arith.addf %41, %43 : vector<8x128xf32>
    %c0_30 = arith.constant 0 : index
    %c0_31 = arith.constant 0 : index
    %45 = vector.load %arg4[%c0_30, %c0_31] : memref<8x128xi8, #tpu.memory_space<vmem>>, vector<8x128xi8>
    %c0_i8 = arith.constant 0 : i8
    %46 = vector.broadcast %c0_i8 : i8 to vector<8x128xi8>
    %47 = arith.cmpi ne, %45, %46 : vector<8x128xi8>
    %cst_32 = arith.constant -1.000000e+09 : f32
    %48 = vector.broadcast %cst_32 : f32 to vector<8x128xf32>
    %49 = arith.select %47, %44, %48 : vector<8x128xi1>, vector<8x128xf32>
    %cst_33 = arith.constant dense<0xFF800000> : vector<8xf32>
    %50 = vector.multi_reduction <maximumf>, %49, %cst_33 [1] : vector<8x128xf32> to vector<8xf32>
    %51 = vector.shape_cast %50 : vector<8xf32> to vector<8x1xf32>
    %52 = vector.broadcast %51 : vector<8x1xf32> to vector<8x128xf32>
    %53 = arith.subf %49, %52 : vector<8x128xf32>
    %54 = math.exp %53 : vector<8x128xf32>
    %cst_34 = arith.constant dense<0.000000e+00> : vector<8xf32>
    %55 = vector.multi_reduction <add>, %54, %cst_34 [1] : vector<8x128xf32> to vector<8xf32>
    %56 = vector.shape_cast %55 : vector<8xf32> to vector<8x1xf32>
    %57 = vector.broadcast %56 : vector<8x1xf32> to vector<8x128xf32>
    %58 = arith.divf %54, %57 : vector<8x128xf32>
    %c0_35 = arith.constant 0 : index
    %c0_36 = arith.constant 0 : index
    %59 = vector.load %arg13[%c0_35, %c0_36] : memref<8x128xf32, #tpu.memory_space<vmem>>, vector<8x128xf32>
    tpu.vector_store %arg13[%c0_35, %c0_36], %44 {strides = array<i32>} : memref<8x128xf32, #tpu.memory_space<vmem>>, vector<8x128xf32>,
    %c0_37 = arith.constant 0 : index
    %c0_38 = arith.constant 0 : index
    %60 = vector.load %arg14[%c0_37, %c0_38] : memref<8x128xf32, #tpu.memory_space<vmem>>, vector<8x128xf32>
    tpu.vector_store %arg14[%c0_37, %c0_38], %58 {strides = array<i32>} : memref<8x128xf32, #tpu.memory_space<vmem>>, vector<8x128xf32>,
    return
  }
  func.func @transform_0(%arg0: i32) -> (i32, i32) {
    %c0_i32 = arith.constant 0 : i32
    %c0_i32_0 = arith.constant 0 : i32
    return %arg0, %c0_i32 : i32, i32
  }
  func.func @transform_1(%arg0: i32) -> (i32, i32) {
    %c0_i32 = arith.constant 0 : i32
    %c0_i32_0 = arith.constant 0 : i32
    return %arg0, %c0_i32 : i32, i32
  }
  func.func @transform_2(%arg0: i32) -> (i32, i32) {
    %c0_i32 = arith.constant 0 : i32
    %c0_i32_0 = arith.constant 0 : i32
    return %arg0, %c0_i32 : i32, i32
  }
  func.func @transform_3(%arg0: i32) -> (i32, i32) {
    %c0_i32 = arith.constant 0 : i32
    %c0_i32_0 = arith.constant 0 : i32
    return %arg0, %c0_i32 : i32, i32
  }
  func.func @transform_4(%arg0: i32) -> (i32, i32) {
    %c0_i32 = arith.constant 0 : i32
    %c0_i32_0 = arith.constant 0 : i32
    %c0_i32_1 = arith.constant 0 : i32
    return %c0_i32, %c0_i32_0 : i32, i32
  }
  func.func @transform_5(%arg0: i32) -> (i32, i32) {
    %c0_i32 = arith.constant 0 : i32
    %c0_i32_0 = arith.constant 0 : i32
    %c0_i32_1 = arith.constant 0 : i32
    return %c0_i32, %c0_i32_0 : i32, i32
  }
  func.func @transform_6(%arg0: i32) -> (i32, i32) {
    %c0_i32 = arith.constant 0 : i32
    %c0_i32_0 = arith.constant 0 : i32
    %c0_i32_1 = arith.constant 0 : i32
    return %c0_i32, %c0_i32_0 : i32, i32
  }
  func.func @transform_7(%arg0: i32) -> (i32, i32) {
    %c0_i32 = arith.constant 0 : i32
    %c0_i32_0 = arith.constant 0 : i32
    %c0_i32_1 = arith.constant 0 : i32
    return %c0_i32, %c0_i32_0 : i32, i32
  }
  func.func @transform_8(%arg0: i32) -> (i32, i32) {
    %c0_i32 = arith.constant 0 : i32
    %c0_i32_0 = arith.constant 0 : i32
    %c0_i32_1 = arith.constant 0 : i32
    return %c0_i32, %c0_i32_0 : i32, i32
  }
  func.func @transform_9(%arg0: i32) -> (i32, i32) {
    %c0_i32 = arith.constant 0 : i32
    %c0_i32_0 = arith.constant 0 : i32
    %c0_i32_1 = arith.constant 0 : i32
    return %c0_i32, %c0_i32_0 : i32, i32
  }
  func.func @transform_10(%arg0: i32) -> (i32, i32) {
    %c0_i32 = arith.constant 0 : i32
    %c0_i32_0 = arith.constant 0 : i32
    %c0_i32_1 = arith.constant 0 : i32
    return %c0_i32, %c0_i32_0 : i32, i32
  }
  func.func @transform_11(%arg0: i32) -> (i32, i32) {
    %c0_i32 = arith.constant 0 : i32
    %c0_i32_0 = arith.constant 0 : i32
    %c0_i32_1 = arith.constant 0 : i32
    return %c0_i32, %c0_i32_0 : i32, i32
  }
  func.func @transform_12(%arg0: i32) -> (i32, i32) {
    %c0_i32 = arith.constant 0 : i32
    %c0_i32_0 = arith.constant 0 : i32
    return %arg0, %c0_i32 : i32, i32
  }
  func.func @transform_13(%arg0: i32) -> (i32, i32) {
    %c0_i32 = arith.constant 0 : i32
    %c0_i32_0 = arith.constant 0 : i32
    return %arg0, %c0_i32 : i32, i32
  }
}

</mosaic_0001>

<llo_original>
// kernel: tpu_custom_call.1
$region0: #{tpu_custom_call.1}
  #allocation0 [shape = 'u32[]', space=smem, size = 0x4, offset = 0x4, fixed_abs, tag = 'smem constant byte address 0x4 - core index']
  #allocation1 [shape = 'u32[144,128]{1,0:T(1,128)}', space=vmem, size = 0x12000, scoped, tag = 'internal scratch']
  #allocation2 [shape = 'f32[1,1]{1,0:T(1,128)S(1)}', space=vmem, size = 0x200, scoped, tag = 'scoped memory for tpu_custom_call.1']
  %s0 = inlined_call_operand.vmem [shape: f32[8,128], index: 0, kind: input, shape index: {}]
  %s1 = inlined_call_operand.vmem [shape: f32[8,128], index: 1, kind: input, shape index: {}]
  %s2 = inlined_call_operand.vmem [shape: f32[8,128], index: 2, kind: input, shape index: {}]
  %s3 = inlined_call_operand.vmem [shape: s8[8,128], index: 3, kind: input, shape index: {}]
  %s4 = inlined_call_operand.vmem [shape: f32[384,192], index: 4, kind: input, shape index: {}]
  %s5 = inlined_call_operand.vmem [shape: f32[1,192], index: 5, kind: input, shape index: {}]
  %s6 = inlined_call_operand.vmem [shape: f32[192,128], index: 6, kind: input, shape index: {}]
  %s7 = inlined_call_operand.vmem [shape: f32[1,128], index: 7, kind: input, shape index: {}]
  %s8 = inlined_call_operand.vmem [shape: f32[128,64], index: 8, kind: input, shape index: {}]
  %s9 = inlined_call_operand.vmem [shape: f32[1,64], index: 9, kind: input, shape index: {}]
  %s10 = inlined_call_operand.vmem [shape: f32[1,64], index: 10, kind: input, shape index: {}]
  %s11 = inlined_call_operand.<no memory space> [shape: f32[1,1], index: 11, kind: input, shape index: {}]
  %s12 = inlined_call_operand.hbm [shape: f32[8,128], index: 12, kind: output, shape index: {0}]
  %s13 = inlined_call_operand.hbm [shape: f32[8,128], index: 13, kind: output, shape index: {1}]
  %14 = xla_tuple %s12, %s13
  %s15 = sld [smem:[#allocation0]]
  $region66: #{tpu_custom_call.1} parent=0
    _
  %s17 = ssub.s32 1, %s15
  %s18 = scalar_select 0, %s17, %s15
  %v19 = vstv %s11
  %20 = vst [vmem:[#allocation2] sm:$0x1] %v19
  $region1: #{tpu_custom_call.1} parent=0
    #allocation3 [shape = 'u8[4096]{0}', space=vmem, size = 0x1000, scoped, tag = 'output window, operand 0, single buffered']
    #allocation4 [shape = 's32[1]{0}', space=sflag, size = 0x4, scoped, tag = 'scoped memory for tpu_custom_call.1']
    #allocation5 [shape = 'u8[4096]{0}', space=vmem, size = 0x1000, scoped, tag = 'output window, operand 1, single buffered']
    #allocation6 [shape = 's32[1]{0}', space=sflag, size = 0x4, scoped, tag = 'scoped memory for tpu_custom_call.1']
    %21 = vsyncpa [#allocation4], 0
    %22 = vsyncpa [#allocation6], 0
    // Predicated region
    $region2: #{tpu_custom_call.1} parent=1 // pred_check
      _
    $region3: #{tpu_custom_call.1} parent=1 // pred_check_branch
      %24 = sbr.rel (0) target = $region5
    $region4: #{tpu_custom_call.1} parent=1 // pred_region
      _
    $region5: #{tpu_custom_call.1} parent=1 // pred_fallthru
      _
    // Predicated region
    $region6: #{tpu_custom_call.1} parent=1 // pred_check
      _
    $region7: #{tpu_custom_call.1} parent=1 // pred_check_branch
      %26 = sbr.rel (0) target = $region9
    $region8: #{tpu_custom_call.1} parent=1 // pred_region
      _
    $region9: #{tpu_custom_call.1} parent=1 // pred_fallthru
      _
    // Predicated region
    $region10: #{tpu_custom_call.1} parent=1 // pred_check
      _
    $region11: #{tpu_custom_call.1} parent=1 // pred_check_branch
      %28 = sbr.rel (0) target = $region13
    $region12: #{tpu_custom_call.1} parent=1 // pred_region
      _
    $region13: #{tpu_custom_call.1} parent=1 // pred_fallthru
      _
    // Predicated region
    $region14: #{tpu_custom_call.1} parent=1 // pred_check
      _
    $region15: #{tpu_custom_call.1} parent=1 // pred_check_branch
      %30 = sbr.rel (0) target = $region17
    $region16: #{tpu_custom_call.1} parent=1 // pred_region
      _
    $region17: #{tpu_custom_call.1} parent=1 // pred_fallthru
      _
    // Predicated region
    $region18: #{tpu_custom_call.1} parent=1 // pred_check
      _
    $region19: #{tpu_custom_call.1} parent=1 // pred_check_branch
      %32 = sbr.rel (0) target = $region21
    $region20: #{tpu_custom_call.1} parent=1 // pred_region
      _
    $region21: #{tpu_custom_call.1} parent=1 // pred_fallthru
      _
    // Predicated region
    $region22: #{tpu_custom_call.1} parent=1 // pred_check
      _
    $region23: #{tpu_custom_call.1} parent=1 // pred_check_branch
      %34 = sbr.rel (0) target = $region25
    $region24: #{tpu_custom_call.1} parent=1 // pred_region
      _
    $region25: #{tpu_custom_call.1} parent=1 // pred_fallthru
      _
    // Predicated region
    $region26: #{tpu_custom_call.1} parent=1 // pred_check
      _
    $region27: #{tpu_custom_call.1} parent=1 // pred_check_branch
      %36 = sbr.rel (0) target = $region29
    $region28: #{tpu_custom_call.1} parent=1 // pred_region
      _
    $region29: #{tpu_custom_call.1} parent=1 // pred_fallthru
      _
    // Predicated region
    $region30: #{tpu_custom_call.1} parent=1 // pred_check
      _
    $region31: #{tpu_custom_call.1} parent=1 // pred_check_branch
      %38 = sbr.rel (0) target = $region33
    $region32: #{tpu_custom_call.1} parent=1 // pred_region
      _
    $region33: #{tpu_custom_call.1} parent=1 // pred_fallthru
      _
    // Predicated region
    $region34: #{tpu_custom_call.1} parent=1 // pred_check
      _
    $region35: #{tpu_custom_call.1} parent=1 // pred_check_branch
      %40 = sbr.rel (0) target = $region37
    $region36: #{tpu_custom_call.1} parent=1 // pred_region
      _
    $region37: #{tpu_custom_call.1} parent=1 // pred_fallthru
      _
    // Predicated region
    $region38: #{tpu_custom_call.1} parent=1 // pred_check
      _
    $region39: #{tpu_custom_call.1} parent=1 // pred_check_branch
      %42 = sbr.rel (0) target = $region41
    $region40: #{tpu_custom_call.1} parent=1 // pred_region
      _
    $region41: #{tpu_custom_call.1} parent=1 // pred_fallthru
      _
    // Predicated region
    $region42: #{tpu_custom_call.1} parent=1 // pred_check
      _
    $region43: #{tpu_custom_call.1} parent=1 // pred_check_branch
      %44 = sbr.rel (0) target = $region45
    $region44: #{tpu_custom_call.1} parent=1 // pred_region
      _
    $region45: #{tpu_custom_call.1} parent=1 // pred_fallthru
      _
    // Predicated region
    $region46: #{tpu_custom_call.1} parent=1 // pred_check
      _
    $region47: #{tpu_custom_call.1} parent=1 // pred_check_branch
      %46 = sbr.rel (0) target = $region49
    $region48: #{tpu_custom_call.1} parent=1 // pred_region
      _
    $region49: #{tpu_custom_call.1} parent=1 // pred_fallthru
      _
    %v49 = vld [vmem:[%s0] sm:$0xff]
    %v50 = vld [vmem:[%s1] sm:$0xff]
    %v51 = vld [vmem:[%s2] sm:$0xff]
    %v52 = vld [vmem:[%s4] sm:$0xff]
    %v53 = vld [vmem:[%s4 + $0x8] sm:$0xff]
    %v54 = vld [vmem:[%s4 + $0x10] sm:$0xff]
    %v55 = vld [vmem:[%s4 + $0x18] sm:$0xff]
    %v56 = vld [vmem:[%s4 + $0x20] sm:$0xff]
    %v57 = vld [vmem:[%s4 + $0x28] sm:$0xff]
    %v58 = vld [vmem:[%s4 + $0x30] sm:$0xff]
    %v59 = vld [vmem:[%s4 + $0x38] sm:$0xff]
    %v60 = vld [vmem:[%s4 + $0x40] sm:$0xff]
    %v61 = vld [vmem:[%s4 + $0x48] sm:$0xff]
    %v62 = vld [vmem:[%s4 + $0x50] sm:$0xff]
    %v63 = vld [vmem:[%s4 + $0x58] sm:$0xff]
    %v64 = vld [vmem:[%s4 + $0x60] sm:$0xff]
    %v65 = vld [vmem:[%s4 + $0x68] sm:$0xff]
    %v66 = vld [vmem:[%s4 + $0x70] sm:$0xff]
    %v67 = vld [vmem:[%s4 + $0x78] sm:$0xff]
    %v68 = vld [vmem:[%s4 + $0x80] sm:$0xff]
    %v69 = vld [vmem:[%s4 + $0x88] sm:$0xff]
    %v70 = vld [vmem:[%s4 + $0x90] sm:$0xff]
    %v71 = vld [vmem:[%s4 + $0x98] sm:$0xff]
    %v72 = vld [vmem:[%s4 + $0xa0] sm:$0xff]
    %v73 = vld [vmem:[%s4 + $0xa8] sm:$0xff]
    %v74 = vld [vmem:[%s4 + $0xb0] sm:$0xff]
    %v75 = vld [vmem:[%s4 + $0xb8] sm:$0xff]
    %v76 = vld [vmem:[%s4 + $0xc0] sm:$0xff]
    %v77 = vld [vmem:[%s4 + $0xc8] sm:$0xff]
    %v78 = vld [vmem:[%s4 + $0xd0] sm:$0xff]
    %v79 = vld [vmem:[%s4 + $0xd8] sm:$0xff]
    %v80 = vld [vmem:[%s4 + $0xe0] sm:$0xff]
    %v81 = vld [vmem:[%s4 + $0xe8] sm:$0xff]
    %v82 = vld [vmem:[%s4 + $0xf0] sm:$0xff]
    %v83 = vld [vmem:[%s4 + $0xf8] sm:$0xff]
    %v84 = vld [vmem:[%s4 + $0x100] sm:$0xff]
    %v85 = vld [vmem:[%s4 + $0x108] sm:$0xff]
    %v86 = vld [vmem:[%s4 + $0x110] sm:$0xff]
    %v87 = vld [vmem:[%s4 + $0x118] sm:$0xff]
    %v88 = vld [vmem:[%s4 + $0x120] sm:$0xff]
    %v89 = vld [vmem:[%s4 + $0x128] sm:$0xff]
    %v90 = vld [vmem:[%s4 + $0x130] sm:$0xff]
    %v91 = vld [vmem:[%s4 + $0x138] sm:$0xff]
    %v92 = vld [vmem:[%s4 + $0x140] sm:$0xff]
    %v93 = vld [vmem:[%s4 + $0x148] sm:$0xff]
    %v94 = vld [vmem:[%s4 + $0x150] sm:$0xff]
    %v95 = vld [vmem:[%s4 + $0x158] sm:$0xff]
    %v96 = vld [vmem:[%s4 + $0x160] sm:$0xff]
    %v97 = vld [vmem:[%s4 + $0x168] sm:$0xff]
    %v98 = vld [vmem:[%s4 + $0x170] sm:$0xff]
    %v99 = vld [vmem:[%s4 + $0x178] sm:$0xff]
    %v100 = vld [vmem:[%s4 + $0x180] sm:$0xff]
    %v101 = vld [vmem:[%s4 + $0x188] sm:$0xff]
    %v102 = vld [vmem:[%s4 + $0x190] sm:$0xff]
    %v103 = vld [vmem:[%s4 + $0x198] sm:$0xff]
    %v104 = vld [vmem:[%s4 + $0x1a0] sm:$0xff]
    %v105 = vld [vmem:[%s4 + $0x1a8] sm:$0xff]
    %v106 = vld [vmem:[%s4 + $0x1b0] sm:$0xff]
    %v107 = vld [vmem:[%s4 + $0x1b8] sm:$0xff]
    %v108 = vld [vmem:[%s4 + $0x1c0] sm:$0xff]
    %v109 = vld [vmem:[%s4 + $0x1c8] sm:$0xff]
    %v110 = vld [vmem:[%s4 + $0x1d0] sm:$0xff]
    %v111 = vld [vmem:[%s4 + $0x1d8] sm:$0xff]
    %v112 = vld [vmem:[%s4 + $0x1e0] sm:$0xff]
    %v113 = vld [vmem:[%s4 + $0x1e8] sm:$0xff]
    %v114 = vld [vmem:[%s4 + $0x1f0] sm:$0xff]
    %v115 = vld [vmem:[%s4 + $0x1f8] sm:$0xff]
    %v116 = vld [vmem:[%s4 + $0x200] sm:$0xff]
    %v117 = vld [vmem:[%s4 + $0x208] sm:$0xff]
    %v118 = vld [vmem:[%s4 + $0x210] sm:$0xff]
    %v119 = vld [vmem:[%s4 + $0x218] sm:$0xff]
    %v120 = vld [vmem:[%s4 + $0x220] sm:$0xff]
    %v121 = vld [vmem:[%s4 + $0x228] sm:$0xff]
    %v122 = vld [vmem:[%s4 + $0x230] sm:$0xff]
    %v123 = vld [vmem:[%s4 + $0x238] sm:$0xff]
    %v124 = vld [vmem:[%s4 + $0x240] sm:$0xff]
    %v125 = vld [vmem:[%s4 + $0x248] sm:$0xff]
    %v126 = vld [vmem:[%s4 + $0x250] sm:$0xff]
    %v127 = vld [vmem:[%s4 + $0x258] sm:$0xff]
    %v128 = vld [vmem:[%s4 + $0x260] sm:$0xff]
    %v129 = vld [vmem:[%s4 + $0x268] sm:$0xff]
    %v130 = vld [vmem:[%s4 + $0x270] sm:$0xff]
    %v131 = vld [vmem:[%s4 + $0x278] sm:$0xff]
    %v132 = vld [vmem:[%s4 + $0x280] sm:$0xff]
    %v133 = vld [vmem:[%s4 + $0x288] sm:$0xff]
    %v134 = vld [vmem:[%s4 + $0x290] sm:$0xff]
    %v135 = vld [vmem:[%s4 + $0x298] sm:$0xff]
    %v136 = vld [vmem:[%s4 + $0x2a0] sm:$0xff]
    %v137 = vld [vmem:[%s4 + $0x2a8] sm:$0xff]
    %v138 = vld [vmem:[%s4 + $0x2b0] sm:$0xff]
    %v139 = vld [vmem:[%s4 + $0x2b8] sm:$0xff]
    %v140 = vld [vmem:[%s4 + $0x2c0] sm:$0xff]
    %v141 = vld [vmem:[%s4 + $0x2c8] sm:$0xff]
    %v142 = vld [vmem:[%s4 + $0x2d0] sm:$0xff]
    %v143 = vld [vmem:[%s4 + $0x2d8] sm:$0xff]
    %v144 = vld [vmem:[%s4 + $0x2e0] sm:$0xff]
    %v145 = vld [vmem:[%s4 + $0x2e8] sm:$0xff]
    %v146 = vld [vmem:[%s4 + $0x2f0] sm:$0xff]
    %v147 = vld [vmem:[%s4 + $0x2f8] sm:$0xff]
    %v148 = vld [vmem:[%s5] sm:$0x3]
    %v150 = vlaneseq
    %v151 = vshrl.u32 %v150, 7
    %v152 = vsub.s32 0, %v151
    %v153 = vrot.slane %v148, %v152
    %v154 = vlaneseq
    %v155 = vshrl.u32 %v154, 7
    %v156 = vsub.s32 1, %v155
    %v157 = vrot.slane %v148, %v156
    %160 = vmatprep.subr.mxu0 %v53
    %161 = vmatpush1.msra.mxu0 %v52
    %162 = vmatprep.subr.mxu0 %v55
    %163 = vmatpush1.msra.mxu0 %v54
    %164 = vmatprep.subr.mxu0 %v57
    %165 = vmatpush1.msra.mxu0 %v56
    %166 = vmatprep.subr.mxu0 %v59
    %167 = vmatpush1.msra.mxu0 %v58
    %168 = vmatprep.subr.mxu0 %v61
    %169 = vmatpush1.msra.mxu0 %v60
    %170 = vmatprep.subr.mxu0 %v63
    %171 = vmatpush1.msra.mxu0 %v62
    %172 = vmatprep.subr.mxu0 %v65
    %173 = vmatpush1.msra.mxu0 %v64
    %174 = vmatprep.subr.mxu0 %v67
    %175 = vmatpush1.msra.mxu0 %v66
    %176 = vmatprep.subr.mxu0 %v69
    %177 = vmatpush1.msra.mxu0 %v68
    %178 = vmatprep.subr.mxu0 %v71
    %179 = vmatpush1.msra.mxu0 %v70
    %180 = vmatprep.subr.mxu0 %v73
    %181 = vmatpush1.msra.mxu0 %v72
    %182 = vmatprep.subr.mxu0 %v75
    %183 = vmatpush1.msra.mxu0 %v74
    %184 = vmatprep.subr.mxu0 %v77
    %185 = vmatpush1.msra.mxu0 %v76
    %186 = vmatprep.subr.mxu0 %v79
    %187 = vmatpush1.msra.mxu0 %v78
    %188 = vmatprep.subr.mxu0 %v81
    %189 = vmatpush1.msra.mxu0 %v80
    %190 = vmatprep.subr.mxu0 %v83
    %191 = vmatpush1.msra.mxu0 %v82
    %192 = vmatprep.subr.mxu0 %v85
    %193 = vmatpush1.msra.mxu0 %v84
    %194 = vmatprep.subr.mxu0 %v87
    %195 = vmatpush1.msra.mxu0 %v86
    %196 = vmatprep.subr.mxu0 %v89
    %197 = vmatpush1.msra.mxu0 %v88
    %198 = vmatprep.subr.mxu0 %v91
    %199 = vmatpush1.msra.mxu0 %v90
    %200 = vmatprep.subr.mxu0 %v93
    %201 = vmatpush1.msra.mxu0 %v92
    %202 = vmatprep.subr.mxu0 %v95
    %203 = vmatpush1.msra.mxu0 %v94
    %204 = vmatprep.subr.mxu0 %v97
    %205 = vmatpush1.msra.mxu0 %v96
    %206 = vmatprep.subr.mxu0 %v99
    %207 = vmatpush1.msra.mxu0 %v98
    %208 = vmatprep.subr.mxu0 %v101
    %209 = vmatpush1.msra.mxu0 %v100
    %210 = vmatprep.subr.mxu0 %v103
    %211 = vmatpush1.msra.mxu0 %v102
    %212 = vmatprep.subr.mxu0 %v105
    %213 = vmatpush1.msra.mxu0 %v104
    %214 = vmatprep.subr.mxu0 %v107
    %215 = vmatpush1.msra.mxu0 %v106
    %216 = vmatprep.subr.mxu0 %v109
    %217 = vmatpush1.msra.mxu0 %v108
    %218 = vmatprep.subr.mxu0 %v111
    %219 = vmatpush1.msra.mxu0 %v110
    %220 = vmatprep.subr.mxu0 %v113
    %221 = vmatpush1.msra.mxu0 %v112
    %222 = vmatprep.subr.mxu0 %v115
    %223 = vmatpush1.msra.mxu0 %v114
    %224 = vmatprep.mubr.f32.mxu0 %v50
    %225 = vmatmul.mubr.f32.gmra.mrb[0].mxu0 %v49
    %v226 = vpop.f32.mrb[0].mxu0
    %v227 = vadd.f32 %v153, %v226
    %v228 = vpop.f32.mrb[0].mxu0
    %v229 = vadd.f32 %v157, %v228
    %230 = vdwg.mxu0
    %231 = vmatprep.subr.mxu0 %v117
    %232 = vmatpush1.msra.mxu0 %v116
    %233 = vmatprep.subr.mxu0 %v119
    %234 = vmatpush1.msra.mxu0 %v118
    %235 = vmatprep.subr.mxu0 %v121
    %236 = vmatpush1.msra.mxu0 %v120
    %237 = vmatprep.subr.mxu0 %v123
    %238 = vmatpush1.msra.mxu0 %v122
    %239 = vmatprep.subr.mxu0 %v125
    %240 = vmatpush1.msra.mxu0 %v124
    %241 = vmatprep.subr.mxu0 %v127
    %242 = vmatpush1.msra.mxu0 %v126
    %243 = vmatprep.subr.mxu0 %v129
    %244 = vmatpush1.msra.mxu0 %v128
    %245 = vmatprep.subr.mxu0 %v131
    %246 = vmatpush1.msra.mxu0 %v130
    %247 = vmatprep.subr.mxu0 %v133
    %248 = vmatpush1.msra.mxu0 %v132
    %249 = vmatprep.subr.mxu0 %v135
    %250 = vmatpush1.msra.mxu0 %v134
    %251 = vmatprep.subr.mxu0 %v137
    %252 = vmatpush1.msra.mxu0 %v136
    %253 = vmatprep.subr.mxu0 %v139
    %254 = vmatpush1.msra.mxu0 %v138
    %255 = vmatprep.subr.mxu0 %v141
    %256 = vmatpush1.msra.mxu0 %v140
    %257 = vmatprep.subr.mxu0 %v143
    %258 = vmatpush1.msra.mxu0 %v142
    %259 = vmatprep.subr.mxu0 %v145
    %260 = vmatpush1.msra.mxu0 %v144
    %261 = vmatprep.subr.mxu0 %v147
    %262 = vmatpush1.msra.mxu0 %v146
    %263 = vmatprep.subr.mxu0 0.0
    %264 = vmatpush1.msra.mxu0 0.0
    %265 = vmatprep.subr.mxu0 0.0
    %266 = vmatpush1.msra.mxu0 0.0
    %267 = vmatprep.subr.mxu0 0.0
    %268 = vmatpush1.msra.mxu0 0.0
    %269 = vmatprep.subr.mxu0 0.0
    %270 = vmatpush1.msra.mxu0 0.0
    %271 = vmatprep.subr.mxu0 0.0
    %272 = vmatpush1.msra.mxu0 0.0
    %273 = vmatprep.subr.mxu0 0.0
    %274 = vmatpush1.msra.mxu0 0.0
    %275 = vmatprep.subr.mxu0 0.0
    %276 = vmatpush1.msra.mxu0 0.0
    %277 = vmatprep.subr.mxu0 0.0
    %278 = vmatpush1.msra.mxu0 0.0
    %279 = vmatprep.subr.mxu0 0.0
    %280 = vmatpush1.msra.mxu0 0.0
    %281 = vmatprep.subr.mxu0 0.0
    %282 = vmatpush1.msra.mxu0 0.0
    %283 = vmatprep.subr.mxu0 0.0
    %284 = vmatpush1.msra.mxu0 0.0
    %285 = vmatprep.subr.mxu0 0.0
    %286 = vmatpush1.msra.mxu0 0.0
    %287 = vmatprep.subr.mxu0 0.0
    %288 = vmatpush1.msra.mxu0 0.0
    %289 = vmatprep.subr.mxu0 0.0
    %290 = vmatpush1.msra.mxu0 0.0
    %291 = vmatprep.subr.mxu0 0.0
    %292 = vmatpush1.msra.mxu0 0.0
    %293 = vmatprep.subr.mxu0 0.0
    %294 = vmatpush1.msra.mxu0 0.0
    %295 = vmatprep.mubr.f32.mxu0 0.0
    %296 = vmatmul.mubr.f32.gmra.mrb[0].mxu0 %v51
    %v297 = vpop.f32.mrb[0].mxu0
    %v298 = vadd.f32 %v227, %v297
    %v299 = vpop.f32.mrb[0].mxu0
    %v300 = vadd.f32 %v229, %v299
    %301 = vdwg.mxu0
    %v302 = vmax.f32 %v298, 0.0
    %v303 = vmax.f32 %v300, 0.0
    %v304 = vld [vmem:[%s6] sm:$0xff]
    %v305 = vld [vmem:[%s6 + $0x8] sm:$0xff]
    %v306 = vld [vmem:[%s6 + $0x10] sm:$0xff]
    %v307 = vld [vmem:[%s6 + $0x18] sm:$0xff]
    %v308 = vld [vmem:[%s6 + $0x20] sm:$0xff]
    %v309 = vld [vmem:[%s6 + $0x28] sm:$0xff]
    %v310 = vld [vmem:[%s6 + $0x30] sm:$0xff]
    %v311 = vld [vmem:[%s6 + $0x38] sm:$0xff]
    %v312 = vld [vmem:[%s6 + $0x40] sm:$0xff]
    %v313 = vld [vmem:[%s6 + $0x48] sm:$0xff]
    %v314 = vld [vmem:[%s6 + $0x50] sm:$0xff]
    %v315 = vld [vmem:[%s6 + $0x58] sm:$0xff]
    %v316 = vld [vmem:[%s6 + $0x60] sm:$0xff]
    %v317 = vld [vmem:[%s6 + $0x68] sm:$0xff]
    %v318 = vld [vmem:[%s6 + $0x70] sm:$0xff]
    %v319 = vld [vmem:[%s6 + $0x78] sm:$0xff]
    %v320 = vld [vmem:[%s6 + $0x80] sm:$0xff]
    %v321 = vld [vmem:[%s6 + $0x88] sm:$0xff]
    %v322 = vld [vmem:[%s6 + $0x90] sm:$0xff]
    %v323 = vld [vmem:[%s6 + $0x98] sm:$0xff]
    %v324 = vld [vmem:[%s6 + $0xa0] sm:$0xff]
    %v325 = vld [vmem:[%s6 + $0xa8] sm:$0xff]
    %v326 = vld [vmem:[%s6 + $0xb0] sm:$0xff]
    %v327 = vld [vmem:[%s6 + $0xb8] sm:$0xff]
    %v328 = vld [vmem:[%s7] sm:$0x1]
    %v330 = vlaneseq
    %v331 = vshrl.u32 %v330, 7
    %v332 = vsub.s32 0, %v331
    %v333 = vrot.slane %v328, %v332
    %vm335 = vcmask 523264
    %v337 = vsel %vm335, %v303, 0
    %339 = vmatprep.subr.mxu0 0.0
    %340 = vmatpush1.msra.mxu0 %v304
    %341 = vmatprep.subr.mxu0 0.0
    %342 = vmatpush1.msra.mxu0 %v305
    %343 = vmatprep.subr.mxu0 0.0
    %344 = vmatpush1.msra.mxu0 %v306
    %345 = vmatprep.subr.mxu0 0.0
    %346 = vmatpush1.msra.mxu0 %v307
    %347 = vmatprep.subr.mxu0 0.0
    %348 = vmatpush1.msra.mxu0 %v308
    %349 = vmatprep.subr.mxu0 0.0
    %350 = vmatpush1.msra.mxu0 %v309
    %351 = vmatprep.subr.mxu0 0.0
    %352 = vmatpush1.msra.mxu0 %v310
    %353 = vmatprep.subr.mxu0 0.0
    %354 = vmatpush1.msra.mxu0 %v311
    %355 = vmatprep.subr.mxu0 0.0
    %356 = vmatpush1.msra.mxu0 %v312
    %357 = vmatprep.subr.mxu0 0.0
    %358 = vmatpush1.msra.mxu0 %v313
    %359 = vmatprep.subr.mxu0 0.0
    %360 = vmatpush1.msra.mxu0 %v314
    %361 = vmatprep.subr.mxu0 0.0
    %362 = vmatpush1.msra.mxu0 %v315
    %363 = vmatprep.subr.mxu0 0.0
    %364 = vmatpush1.msra.mxu0 %v316
    %365 = vmatprep.subr.mxu0 0.0
    %366 = vmatpush1.msra.mxu0 %v317
    %367 = vmatprep.subr.mxu0 0.0
    %368 = vmatpush1.msra.mxu0 %v318
    %369 = vmatprep.subr.mxu0 0.0
    %370 = vmatpush1.msra.mxu0 %v319
    %371 = vmatprep.subr.mxu0 0.0
    %372 = vmatpush1.msra.mxu0 %v320
    %373 = vmatprep.subr.mxu0 0.0
    %374 = vmatpush1.msra.mxu0 %v321
    %375 = vmatprep.subr.mxu0 0.0
    %376 = vmatpush1.msra.mxu0 %v322
    %377 = vmatprep.subr.mxu0 0.0
    %378 = vmatpush1.msra.mxu0 %v323
    %379 = vmatprep.subr.mxu0 0.0
    %380 = vmatpush1.msra.mxu0 %v324
    %381 = vmatprep.subr.mxu0 0.0
    %382 = vmatpush1.msra.mxu0 %v325
    %383 = vmatprep.subr.mxu0 0.0
    %384 = vmatpush1.msra.mxu0 %v326
    %385 = vmatprep.subr.mxu0 0.0
    %386 = vmatpush1.msra.mxu0 %v327
    %387 = vmatprep.subr.mxu0 0.0
    %388 = vmatpush1.msra.mxu0 0.0
    %389 = vmatprep.subr.mxu0 0.0
    %390 = vmatpush1.msra.mxu0 0.0
    %391 = vmatprep.subr.mxu0 0.0
    %392 = vmatpush1.msra.mxu0 0.0
    %393 = vmatprep.subr.mxu0 0.0
    %394 = vmatpush1.msra.mxu0 0.0
    %395 = vmatprep.subr.mxu0 0.0
    %396 = vmatpush1.msra.mxu0 0.0
    %397 = vmatprep.subr.mxu0 0.0
    %398 = vmatpush1.msra.mxu0 0.0
    %399 = vmatprep.subr.mxu0 0.0
    %400 = vmatpush1.msra.mxu0 0.0
    %401 = vmatprep.subr.mxu0 0.0
    %402 = vmatpush1.msra.mxu0 0.0
    %403 = vmatprep.mubr.f32.mxu0 %v337
    %404 = vmatmul.mubr.f32.gmra.mrb[0].mxu0 %v302
    %v405 = vpop.f32.mrb[0].mxu0
    %v406 = vadd.f32 %v333, %v405
    %v407 = vpop.f32.mrb[0].mxu0
    %408 = vdwg.mxu0
    %v409 = vld [vmem:[%s8] sm:$0xff]
    %v410 = vld [vmem:[%s8 + $0x8] sm:$0xff]
    %v411 = vld [vmem:[%s8 + $0x10] sm:$0xff]
    %v412 = vld [vmem:[%s8 + $0x18] sm:$0xff]
    %v413 = vld [vmem:[%s8 + $0x20] sm:$0xff]
    %v414 = vld [vmem:[%s8 + $0x28] sm:$0xff]
    %v415 = vld [vmem:[%s8 + $0x30] sm:$0xff]
    %v416 = vld [vmem:[%s8 + $0x38] sm:$0xff]
    %v417 = vld [vmem:[%s8 + $0x40] sm:$0xff]
    %v418 = vld [vmem:[%s8 + $0x48] sm:$0xff]
    %v419 = vld [vmem:[%s8 + $0x50] sm:$0xff]
    %v420 = vld [vmem:[%s8 + $0x58] sm:$0xff]
    %v421 = vld [vmem:[%s8 + $0x60] sm:$0xff]
    %v422 = vld [vmem:[%s8 + $0x68] sm:$0xff]
    %v423 = vld [vmem:[%s8 + $0x70] sm:$0xff]
    %v424 = vld [vmem:[%s8 + $0x78] sm:$0xff]
    %v425 = vld [vmem:[%s9] sm:$0x1]
    %v427 = vlaneseq
    %v428 = vshrl.u32 %v427, 7
    %v429 = vsub.s32 0, %v428
    %v430 = vrot.slane %v425, %v429
    %432 = vmatprep.subr.mxu0 0.0
    %433 = vmatpush1.msra.mxu0 %v409
    %434 = vmatprep.subr.mxu0 0.0
    %435 = vmatpush1.msra.mxu0 %v410
    %436 = vmatprep.subr.mxu0 0.0
    %437 = vmatpush1.msra.mxu0 %v411
    %438 = vmatprep.subr.mxu0 0.0
    %439 = vmatpush1.msra.mxu0 %v412
    %440 = vmatprep.subr.mxu0 0.0
    %441 = vmatpush1.msra.mxu0 %v413
    %442 = vmatprep.subr.mxu0 0.0
    %443 = vmatpush1.msra.mxu0 %v414
    %444 = vmatprep.subr.mxu0 0.0
    %445 = vmatpush1.msra.mxu0 %v415
    %446 = vmatprep.subr.mxu0 0.0
    %447 = vmatpush1.msra.mxu0 %v416
    %448 = vmatprep.subr.mxu0 0.0
    %449 = vmatpush1.msra.mxu0 %v417
    %450 = vmatprep.subr.mxu0 0.0
    %451 = vmatpush1.msra.mxu0 %v418
    %452 = vmatprep.subr.mxu0 0.0
    %453 = vmatpush1.msra.mxu0 %v419
    %454 = vmatprep.subr.mxu0 0.0
    %455 = vmatpush1.msra.mxu0 %v420
    %456 = vmatprep.subr.mxu0 0.0
    %457 = vmatpush1.msra.mxu0 %v421
    %458 = vmatprep.subr.mxu0 0.0
    %459 = vmatpush1.msra.mxu0 %v422
    %460 = vmatprep.subr.mxu0 0.0
    %461 = vmatpush1.msra.mxu0 %v423
    %462 = vmatprep.subr.mxu0 0.0
    %463 = vmatpush1.msra.mxu0 %v424
    %464 = vmatprep.subr.mxu0 0.0
    %465 = vmatpush1.msra.mxu0 0.0
    %466 = vmatprep.subr.mxu0 0.0
    %467 = vmatpush1.msra.mxu0 0.0
    %468 = vmatprep.subr.mxu0 0.0
    %469 = vmatpush1.msra.mxu0 0.0
    %470 = vmatprep.subr.mxu0 0.0
    %471 = vmatpush1.msra.mxu0 0.0
    %472 = vmatprep.subr.mxu0 0.0
    %473 = vmatpush1.msra.mxu0 0.0
    %474 = vmatprep.subr.mxu0 0.0
    %475 = vmatpush1.msra.mxu0 0.0
    %476 = vmatprep.subr.mxu0 0.0
    %477 = vmatpush1.msra.mxu0 0.0
    %478 = vmatprep.subr.mxu0 0.0
    %479 = vmatpush1.msra.mxu0 0.0
    %480 = vmatprep.subr.mxu0 0.0
    %481 = vmatpush1.msra.mxu0 0.0
    %482 = vmatprep.subr.mxu0 0.0
    %483 = vmatpush1.msra.mxu0 0.0
    %484 = vmatprep.subr.mxu0 0.0
    %485 = vmatpush1.msra.mxu0 0.0
    %486 = vmatprep.subr.mxu0 0.0
    %487 = vmatpush1.msra.mxu0 0.0
    %488 = vmatprep.subr.mxu0 0.0
    %489 = vmatpush1.msra.mxu0 0.0
    %490 = vmatprep.subr.mxu0 0.0
    %491 = vmatpush1.msra.mxu0 0.0
    %492 = vmatprep.subr.mxu0 0.0
    %493 = vmatpush1.msra.mxu0 0.0
    %494 = vmatprep.subr.mxu0 0.0
    %495 = vmatpush1.msra.mxu0 0.0
    %496 = vmatprep.mubr.f32.mxu0 0.0
    %497 = vmatmul.mubr.f32.gmra.mrb[0].mxu0 %v406
    %v498 = vpop.f32.mrb[0].mxu0
    %v499 = vadd.f32 %v430, %v498
    %v500 = vpop.f32.mrb[0].mxu0
    %501 = vdwg.mxu0
    %v502 = vmax.f32 %v499, 0.0
    %v503 = vld [vmem:[%s10] sm:$0x1]
    %v505 = vlaneseq
    %v506 = vshrl.u32 %v505, 7
    %v507 = vsub.s32 0, %v506
    %v508 = vrot.slane %v503, %v507
    %v510 = vmul.f32 %v502, %v508
    %v511 = vsel %vm335, %v510, 0.0
    %512 = vadd.xlane.f32.xlu0 %v511
    %v513 = vpop.xlane.xlu0 %512
    %v514 = vld [vmem:[#allocation2] sm:$0x1]
    %v516 = vlaneseq
    %v517 = vshrl.u32 %v516, 7
    %v518 = vsub.s32 0, %v517
    %v519 = vrot.slane %v514, %v518
    %v521 = vadd.f32 %v513, %v519
    %v522 = vsub.f32 0.0, %v521
    %v523 = vmul.f32 %v522, 1.442695
    %v524 = vpow.pop %v523
    %v525 = vadd.f32 %v524, 1.0
    %v526 = vrcp.pop %v525
    %v527 = vmul.f32 1.0, %v526
    %v528 = vsub.f32 1.0, %v527
    %530 = vset.pattern.permute.xlu0 0
    %531 = vperm.xlu0 %530, %v527
    %v532 = vpop.permute.xlu0 %531
    %v534 = vmul.f32 %v532, %v49
    %536 = vset.pattern.permute.xlu0 0
    %537 = vperm.xlu0 %536, %v528
    %v538 = vpop.permute.xlu0 %537
    %v540 = vmul.f32 %v538, %v50
    %v541 = vadd.f32 %v534, %v540
    %v542 = vld [vmem:[%s3] sm:$0x3]
    %vm543 = vnez %v542
    %v544 = vsel %vm543, 16843009, 0
    %v545 = vunpack.c.0.s8 %v544
    %vm546 = vcmp.ne.s32.totalorder %v545, 0
    %v547 = vsel %vm546, %v541, -1e+09
    %548 = vmax.xlane.f32.xlu0 %v547
    %v549 = vpop.xlane.xlu0 %548
    %v550 = vsub.f32 %v547, %v549
    %v551 = vmul.f32 %v550, 1.442695
    %v552 = vpow.pop %v551
    %553 = vadd.xlane.f32.xlu0 %v552
    %v554 = vpop.xlane.xlu0 %553
    %v555 = vrcp.pop %v554
    %v556 = vmul.f32 %v552, %v555
    %557 = vst [vmem:[#allocation3] sm:$0xff] %v541
    %558 = vst [vmem:[#allocation5] sm:$0xff] %v556
    // Predicated region
    $region50: #{tpu_custom_call.1} parent=1 // pred_check
      _
    $region51: #{tpu_custom_call.1} parent=1 // pred_check_branch
      %560 = sbr.rel (0) target = $region53
    $region52: #{tpu_custom_call.1} parent=1 // pred_region
      %s562 = ssub.s32 128, 128
      %563 = vsyncadd [#allocation4], %s562
      %s565 = sshll.u32 [#allocation3], 4
      %s566 = int_to_ptr.vmem [resolvable:$true] %s565
      %568 = dma.vmem_to_hbm [thread:$0]  %s566, 128, %s12, [#allocation4]
    $region53: #{tpu_custom_call.1} parent=1 // pred_fallthru
      _
    // Predicated region
    $region54: #{tpu_custom_call.1} parent=1 // pred_check
      _
    $region55: #{tpu_custom_call.1} parent=1 // pred_check_branch
      %570 = sbr.rel (0) target = $region57
    $region56: #{tpu_custom_call.1} parent=1 // pred_region
      %s572 = ssub.s32 128, 128
      %573 = vsyncadd [#allocation6], %s572
      %s575 = sshll.u32 [#allocation5], 4
      %s576 = int_to_ptr.vmem [resolvable:$true] %s575
      %578 = dma.vmem_to_hbm [thread:$0]  %s576, 128, %s13, [#allocation6]
    $region57: #{tpu_custom_call.1} parent=1 // pred_fallthru
      _
    // Predicated region
    $region58: #{tpu_custom_call.1} parent=1 // pred_check
      _
    $region59: #{tpu_custom_call.1} parent=1 // pred_check_branch
      %580 = sbr.rel (0) target = $region61
    $region60: #{tpu_custom_call.1} parent=1 // pred_region
      %581 = dma.done [#allocation4], 128
    $region61: #{tpu_custom_call.1} parent=1 // pred_fallthru
      _
    // Predicated region
    $region62: #{tpu_custom_call.1} parent=1 // pred_check
      _
    $region63: #{tpu_custom_call.1} parent=1 // pred_check_branch
      %583 = sbr.rel (0) target = $region65
    $region64: #{tpu_custom_call.1} parent=1 // pred_region
      %584 = dma.done [#allocation6], 128
    $region65: #{tpu_custom_call.1} parent=1 // pred_fallthru
      _
    %585 = vsyncpa [#allocation4], 1
    %586 = vsyncpa [#allocation6], 1

</llo_original>
